<compile_context>
chip_gen: v6e
topology: v6e:2x2x1
jax: 0.10.0
libtpu: 0.0.40
codegen_flags: <defaults>
</compile_context>

<pallas_src>
import functools

import jax
import jax.numpy as jnp
import numpy as np
from jax import lax
from jax.experimental import pallas as pl
from jax.experimental.pallas import tpu as pltpu

# torch F.normalize clamps the norm at eps=1e-12; clamping the *squared* norm
# at eps**2 under rsqrt is the identical function.
_EPS_SQ = 1e-24
# Scoped VMEM: comfortably below v7x's 64 MiB/TC, above the 32 MiB default.
_VMEM_LIMIT_BYTES = 40 * 1024 * 1024
# Target size of one streamed (TN, TM, C) negatives block (x2 double-buffered).
_NEG_BLOCK_BYTES = 8 * 1024 * 1024
_TM_CAP = 1024      # rows per tile
_TN_CAP = 16        # negatives per chunk (fully unrolled in-kernel)


def _row_sum(v):
    """Sum over the last (lane) axis of a (TM, C) f32 array -> (TM, 1).

    Lane chunks are pre-accumulated on the VALU (4 slots, slack) so only a
    single 128-lane cross-lane reduce per vreg-row hits the XLU.
    """
    c = v.shape[-1]
    if c > 128 and c % 128 == 0:
        acc = v[:, 0:128]
        for t in range(1, c // 128):
            acc = acc + v[:, t * 128:(t + 1) * 128]
        v = acc
    return jnp.sum(v, axis=-1, keepdims=True)


def _tree(vals, op):
    """Pairwise tree reduction of a Python list (better ILP than a chain)."""
    vals = list(vals)
    while len(vals) > 1:
        nxt = [op(vals[i], vals[i + 1]) for i in range(0, len(vals) - 1, 2)]
        if len(vals) % 2:
            nxt.append(vals[-1])
        vals = nxt
    return vals[0]


def _contrastive_kernel(mask_ref, x_ref, q_ref, neg_ref, out_ref,
                        xn_ref, pos_ref, m_ref, s_ref, nmax_ref, *,
                        inv_temperature, num_negatives, tn):
    """Grid: (row-tiles 'parallel', negative-chunks 'arbitrary').

    mask_ref: (TM, 1)     f32 row mask (0 for masked / padded rows)
    x_ref:    (TM, C)     encoded features tile (native dtype)
    q_ref:    (TM, C)     quantized (positive) features tile
    neg_ref:  (TN, TM, C) chunk of negatives
    out_ref:  (1, 8, 128) rows 0..3 = masked loss-sum, rows 4..7 = correct-sum
    scratch:  xn (TM,C) f32, pos/m/s/nmax (TM,1) f32
    """
    k = pl.program_id(1)
    last_k = pl.num_programs(1) - 1

    @pl.when(k == 0)
    def _init():
        x = x_ref[...].astype(jnp.float32)
        q = q_ref[...].astype(jnp.float32)
        x_ssq = _row_sum(x * x)
        q_ssq = _row_sum(q * q)
        # Fold 1/temperature into the normalized query once: every similarity
        # below is then already a logit.
        xn = x * (lax.rsqrt(jnp.maximum(x_ssq, _EPS_SQ)) * inv_temperature)
        qn = q * lax.rsqrt(jnp.maximum(q_ssq, _EPS_SQ))
        xn_ref[...] = xn
        pos = _row_sum(xn * qn)                        # logit_0
        pos_ref[...] = pos
        m_ref[...] = pos                               # online-LSE init
        s_ref[...] = jnp.ones_like(pos)                # exp(pos - pos)
        nmax_ref[...] = jnp.full_like(pos, -jnp.inf)

    xn = xn_ref[...]
    base = k * tn
    ragged = (num_negatives % tn) != 0

    # Fully unrolled chunk of TN negatives (independent work for the LLO
    # scheduler to interleave).
    sims = []
    for j in range(tn):
        g = neg_ref[j].astype(jnp.float32)             # (TM, C)
        dot = _row_sum(xn * g)                         # (TM, 1)
        gss = _row_sum(g * g)                          # (TM, 1)
        sim = dot * lax.rsqrt(jnp.maximum(gss, _EPS_SQ))   # logit_{base+j}
        if ragged:
            # Last chunk may read garbage past N: mask before it enters LSE.
            sim = jnp.where(base + j < num_negatives, sim, -jnp.inf)
        sims.append(sim)

    # Batched (per-chunk) online-logsumexp update: one carry rescale per chunk.
    cmax = _tree(sims, jnp.maximum)
    m_old = m_ref[...]
    m_new = jnp.maximum(m_old, cmax)
    terms = [s_ref[...] * jnp.exp(m_old - m_new)]
    terms += [jnp.exp(sim - m_new) for sim in sims]
    s_ref[...] = _tree(terms, lambda a, b: a + b)
    m_ref[...] = m_new
    nmax_ref[...] = jnp.maximum(nmax_ref[...], cmax)

    @pl.when(k == last_k)
    def _finalize():
        pos = pos_ref[...]
        # cross-entropy with target class 0: logsumexp(logits) - logit_0
        loss_rows = (m_ref[...] - pos) + jnp.log(s_ref[...])     # (TM, 1)
        # argmax(logits) == 0  <=>  pos >= max(neg)  (ties go to class 0)
        corr_rows = (pos >= nmax_ref[...]).astype(jnp.float32)
        valid = mask_ref[...] > 0.0
        # jnp.where (not multiply) so NaNs from garbage / padded rows can't leak.
        loss_rows = jnp.where(valid, loss_rows, 0.0)
        corr_rows = jnp.where(valid, corr_rows, 0.0)
        loss_sum = jnp.sum(loss_rows, axis=0, keepdims=True)     # (1, 1)
        corr_sum = jnp.sum(corr_rows, axis=0, keepdims=True)     # (1, 1)
        row_idx = lax.broadcasted_iota(jnp.int32, (8, 128), 0)
        out_ref[0] = jnp.where(row_idx < 4,
                               jnp.broadcast_to(loss_sum, (8, 128)),
                               jnp.broadcast_to(corr_sum, (8, 128)))


def _choose_tiles(BT, N, C, neg_itemsize):
    """Pick (TM rows per tile, TN negatives per chunk)."""
    if BT <= 256:
        tm = BT                                   # single / full-dim row tile
    else:
        # >= ~4 row tiles (>=2 per v7x TensorCore), rows a multiple of 8.
        tm = min(_TM_CAP, max(128, (((BT + 3) // 4) + 7) // 8 * 8))

    cap = max(1, _NEG_BLOCK_BYTES // max(1, tm * C * neg_itemsize))
    cap = int(min(cap, _TN_CAP, N))
    tn = 1
    for d in range(cap, 0, -1):                   # prefer a divisor of N
        if N % d == 0:
            tn = d
            break
    if tn < min(4, cap):                          # poor divisor (e.g. prime N)
        tn = cap                                  # -> ragged chunk, masked in-kernel
    return tm, tn


def wav2vec2_contrastive_loss(x, quantized, negatives, mask=None,
                              temperature: float = 0.1):
    """JAX/Pallas equivalent of Wav2Vec2ContrastiveLoss.forward.

    x:          (B, T, C)
    quantized:  (B, T, C)
    negatives:  (N, B, T, C)
    mask:       optional (B, T) bool
    returns:    (loss, accuracy) -- sum-reduced CE loss, mean accuracy
    """
    B, T, C = x.shape
    N = negatives.shape[0]
    BT = B * T

    # Native dtype throughout (no f32 copy of the HBM-dominant negatives), and
    # no padding of the big tensors: contiguous reshapes only.
    x2 = x.reshape(BT, C)
    q2 = quantized.reshape(BT, C)
    n3 = negatives.reshape(N, BT, C)

    TM, TN = _choose_tiles(BT, N, C, jnp.dtype(negatives.dtype).itemsize)
    R = pl.cdiv(BT, TM)
    KN = pl.cdiv(N, TN)
    rows_pad = R * TM

    # Row mask (tiny): ones when mask is None, zero-padded for ragged row tiles.
    if mask is None:
        mvec = jnp.ones((BT,), jnp.float32)
    else:
        mvec = mask.reshape(BT).astype(jnp.float32)
    if rows_pad > BT:
        mvec = jnp.concatenate(
            [mvec, jnp.zeros((rows_pad - BT,), jnp.float32)])
    mask2 = mvec.reshape(rows_pad, 1)

    kernel = functools.partial(
        _contrastive_kernel,
        inv_temperature=1.0 / float(temperature),
        num_negatives=N,
        tn=TN)

    out = pl.pallas_call(
        kernel,
        out_shape=jax.ShapeDtypeStruct((R, 8, 128), jnp.float32),
        grid=(R, KN),
        in_specs=[
            pl.BlockSpec((TM, 1), lambda i, k: (i, 0)),          # mask
            pl.BlockSpec((TM, C), lambda i, k: (i, 0)),          # x
            pl.BlockSpec((TM, C), lambda i, k: (i, 0)),          # quantized
            pl.BlockSpec((TN, TM, C), lambda i, k: (k, i, 0)),   # negatives
        ],
        out_specs=pl.BlockSpec((1, 8, 128), lambda i, k: (i, 0, 0)),
        scratch_shapes=[
            pltpu.VMEM((TM, C), jnp.float32),   # xn (normalized, 1/temp folded)
            pltpu.VMEM((TM, 1), jnp.float32),   # pos logit
            pltpu.VMEM((TM, 1), jnp.float32),   # running max m
            pltpu.VMEM((TM, 1), jnp.float32),   # running sum s
            pltpu.VMEM((TM, 1), jnp.float32),   # running max over negatives
        ],
        compiler_params=pltpu.CompilerParams(
            dimension_semantics=("parallel", "arbitrary"),
            vmem_limit_bytes=_VMEM_LIMIT_BYTES),
    )(mask2, x2, q2, n3)

    # Tiny cross-tile scalar glue in plain JAX.
    loss = jnp.sum(out[:, 0, 0])
    correct = jnp.sum(out[:, 4, 0])
    if mask is not None:
        total = jnp.sum(mask.astype(jnp.float32))
        accuracy = jnp.where(total > 0, correct / jnp.maximum(total, 1.0), 0.0)
    else:
        accuracy = correct / float(BT)
    return loss, accuracy


def _reference(x, quantized, negatives, mask, temperature):
    """Pure-JAX reference matching the PyTorch forward semantics."""
    def nrm(v):
        return v / jnp.maximum(
            jnp.sqrt(jnp.sum(v * v, axis=-1, keepdims=True)), 1e-12)

    xn, qn, gn = nrm(x), nrm(quantized), nrm(negatives)
    B, T, C = x.shape
    N = negatives.shape[0]
    BT = B * T
    xf = xn.reshape(BT, C)
    qf = qn.reshape(BT, C)
    gf = jnp.transpose(gn, (1, 2, 0, 3)).reshape(BT, N, C)

    pos = jnp.sum(xf * qf, axis=-1, keepdims=True) / temperature      # (BT, 1)
    negs = jnp.einsum('tc,tnc->tn', xf, gf,
                      precision=lax.Precision.HIGHEST) / temperature  # (BT, N)
    logits = jnp.concatenate([pos, negs], axis=1)                     # (BT, 1+N)

    per_row = jax.nn.logsumexp(logits, axis=-1) - logits[:, 0]
    corr = (jnp.argmax(logits, axis=-1) == 0).astype(jnp.float32)

    if mask is not None:
        mf = mask.reshape(-1).astype(jnp.float32)
        loss = jnp.sum(per_row * mf)
        total = jnp.sum(mf)
        acc = jnp.where(total > 0,
                        jnp.sum(corr * mf) / jnp.maximum(total, 1.0), 0.0)
    else:
        loss = jnp.sum(per_row)
        acc = jnp.mean(corr)
    return loss, acc


if __name__ == "__main__":
    temperature = 0.1
    key = jax.random.PRNGKey(0)

    # --- Test 1: small shapes, single row tile, single negative chunk. ---
    B, T, C, N = 2, 8, 32, 4
    kx, kq, kn, km, key = jax.random.split(key, 5)
    x = jax.random.normal(kx, (B, T, C), dtype=jnp.float32)
    quantized = jax.random.normal(kq, (B, T, C), dtype=jnp.float32)
    negatives = jax.random.normal(kn, (N, B, T, C), dtype=jnp.float32)
    mask = jax.random.bernoulli(km, 0.7, (B, T))

    loss, acc = wav2vec2_contrastive_loss(x, quantized, negatives, mask,
                                          temperature=temperature)
    jax.block_until_ready((loss, acc))
    ref_loss, ref_acc = _reference(x, quantized, negatives, mask, temperature)
    np.testing.assert_allclose(np.asarray(loss), np.asarray(ref_loss),
                               rtol=1e-4, atol=1e-4)
    np.testing.assert_allclose(np.asarray(acc), np.asarray(ref_acc),
                               rtol=1e-6, atol=1e-6)

    # Unmasked path.
    loss2, acc2 = wav2vec2_contrastive_loss(x, quantized, negatives, None,
                                            temperature=temperature)
    jax.block_until_ready((loss2, acc2))
    ref_loss2, ref_acc2 = _reference(x, quantized, negatives, None, temperature)
    np.testing.assert_allclose(np.asarray(loss2), np.asarray(ref_loss2),
                               rtol=1e-4, atol=1e-4)
    np.testing.assert_allclose(np.asarray(acc2), np.asarray(ref_acc2),
                               rtol=1e-6, atol=1e-6)

    # --- Test 2: multiple row tiles (ragged last tile), multiple negative
    #     chunks and a ragged last chunk (N=23 -> TN=16). ---
    B2, T2, C2, N2 = 2, 150, 64, 23
    kx, kq, kn, km, key = jax.random.split(key, 5)
    xb = jax.random.normal(kx, (B2, T2, C2), dtype=jnp.float32)
    qb = jax.random.normal(kq, (B2, T2, C2), dtype=jnp.float32)
    nb = jax.random.normal(kn, (N2, B2, T2, C2), dtype=jnp.float32)
    mb = jax.random.bernoulli(km, 0.6, (B2, T2))
    loss3, acc3 = wav2vec2_contrastive_loss(xb, qb, nb, mb,
                                            temperature=temperature)
    jax.block_until_ready((loss3, acc3))
    ref_loss3, ref_acc3 = _reference(xb, qb, nb, mb, temperature)
    np.testing.assert_allclose(np.asarray(loss3), np.asarray(ref_loss3),
                               rtol=1e-4, atol=1e-3)
    np.testing.assert_allclose(np.asarray(acc3), np.asarray(ref_acc3),
                               rtol=1e-6, atol=1e-6)

    # bf16 inputs exercise the native-dtype (half HBM traffic) streaming path.
    loss_bf, acc_bf = wav2vec2_contrastive_loss(
        x.astype(jnp.bfloat16), quantized.astype(jnp.bfloat16),
        negatives.astype(jnp.bfloat16), mask, temperature=temperature)
    jax.block_until_ready((loss_bf, acc_bf))
    assert np.isfinite(np.asarray(loss_bf)) and np.isfinite(np.asarray(acc_bf))

    print("KERNEL_OK")
</pallas_src>

<mosaic_0001>
module attributes {stable_mosaic.version = 11 : i64} {
  func.func @_contrastive_kernel(%arg0: i32, %arg1: i32, %arg2: memref<16x1xf32, #tpu.memory_space<vmem>>, %arg3: memref<16x32xf32, #tpu.memory_space<vmem>>, %arg4: memref<16x32xf32, #tpu.memory_space<vmem>>, %arg5: memref<4x16x32xf32, #tpu.memory_space<vmem>>, %arg6: memref<1x8x128xf32, #tpu.memory_space<vmem>>, %arg7: memref<16x32xf32, #tpu.memory_space<vmem>>, %arg8: memref<16x1xf32, #tpu.memory_space<vmem>>, %arg9: memref<16x1xf32, #tpu.memory_space<vmem>>, %arg10: memref<16x1xf32, #tpu.memory_space<vmem>>, %arg11: memref<16x1xf32, #tpu.memory_space<vmem>>) attributes {dimension_semantics = [#tpu.dimension_semantics<parallel>, #tpu.dimension_semantics<arbitrary>], iteration_bounds = array<i64: 1, 1>, scalar_prefetch = 0 : i64, scratch_operands = 5 : i64, tpu.core_type = #tpu.core_type<tc>, window_params = [{transform_indices = @transform_0, window_bounds = array<i64: 16, 1>}, {transform_indices = @transform_1, window_bounds = array<i64: 16, 32>}, {transform_indices = @transform_2, window_bounds = array<i64: 16, 32>}, {transform_indices = @transform_3, window_bounds = array<i64: 4, 16, 32>}, {transform_indices = @transform_4, window_bounds = array<i64: 1, 8, 128>}]} {
    %c0_i32 = arith.constant 0 : i32
    %0 = arith.cmpi eq, %arg1, %c0_i32 : i32
    %1 = arith.extui %0 : i1 to i32
    %c0_i32_0 = arith.constant 0 : i32
    %2 = arith.cmpi ne, %1, %c0_i32_0 : i32
    scf.if %2 {
      %c0_36 = arith.constant 0 : index
      %c0_37 = arith.constant 0 : index
      %81 = vector.load %arg3[%c0_36, %c0_37] : memref<16x32xf32, #tpu.memory_space<vmem>>, vector<16x32xf32>
      %c0_38 = arith.constant 0 : index
      %c0_39 = arith.constant 0 : index
      %82 = vector.load %arg4[%c0_38, %c0_39] : memref<16x32xf32, #tpu.memory_space<vmem>>, vector<16x32xf32>
      %83 = arith.mulf %81, %81 : vector<16x32xf32>
      %cst_40 = arith.constant dense<0.000000e+00> : vector<16xf32>
      %84 = vector.multi_reduction <add>, %83, %cst_40 [1] : vector<16x32xf32> to vector<16xf32>
      %85 = vector.shape_cast %84 : vector<16xf32> to vector<16x1xf32>
      %86 = arith.mulf %82, %82 : vector<16x32xf32>
      %cst_41 = arith.constant dense<0.000000e+00> : vector<16xf32>
      %87 = vector.multi_reduction <add>, %86, %cst_41 [1] : vector<16x32xf32> to vector<16xf32>
      %88 = vector.shape_cast %87 : vector<16xf32> to vector<16x1xf32>
      %cst_42 = arith.constant 1.000000e-24 : f32
      %89 = vector.broadcast %cst_42 : f32 to vector<16x1xf32>
      %90 = arith.maximumf %85, %89 : vector<16x1xf32>
      %91 = math.rsqrt %90 : vector<16x1xf32>
      %cst_43 = arith.constant 1.000000e+01 : f32
      %92 = vector.broadcast %cst_43 : f32 to vector<16x1xf32>
      %93 = arith.mulf %91, %92 : vector<16x1xf32>
      %94 = vector.broadcast %93 : vector<16x1xf32> to vector<16x32xf32>
      %95 = arith.mulf %81, %94 : vector<16x32xf32>
      %cst_44 = arith.constant 1.000000e-24 : f32
      %96 = vector.broadcast %cst_44 : f32 to vector<16x1xf32>
      %97 = arith.maximumf %88, %96 : vector<16x1xf32>
      %98 = math.rsqrt %97 : vector<16x1xf32>
      %99 = vector.broadcast %98 : vector<16x1xf32> to vector<16x32xf32>
      %100 = arith.mulf %82, %99 : vector<16x32xf32>
      %c0_45 = arith.constant 0 : index
      %c0_46 = arith.constant 0 : index
      %101 = vector.load %arg7[%c0_45, %c0_46] : memref<16x32xf32, #tpu.memory_space<vmem>>, vector<16x32xf32>
      tpu.vector_store %arg7[%c0_45, %c0_46], %95 {strides = array<i32>} : memref<16x32xf32, #tpu.memory_space<vmem>>, vector<16x32xf32>,
      %102 = arith.mulf %95, %100 : vector<16x32xf32>
      %cst_47 = arith.constant dense<0.000000e+00> : vector<16xf32>
      %103 = vector.multi_reduction <add>, %102, %cst_47 [1] : vector<16x32xf32> to vector<16xf32>
      %104 = vector.shape_cast %103 : vector<16xf32> to vector<16x1xf32>
      %c0_48 = arith.constant 0 : index
      %c0_49 = arith.constant 0 : index
      %105 = vector.load %arg8[%c0_48, %c0_49] : memref<16x1xf32, #tpu.memory_space<vmem>>, vector<16x1xf32>
      tpu.vector_store %arg8[%c0_48, %c0_49], %104 {strides = array<i32>} : memref<16x1xf32, #tpu.memory_space<vmem>>, vector<16x1xf32>,
      %c0_50 = arith.constant 0 : index
      %c0_51 = arith.constant 0 : index
      %106 = vector.load %arg9[%c0_50, %c0_51] : memref<16x1xf32, #tpu.memory_space<vmem>>, vector<16x1xf32>
      tpu.vector_store %arg9[%c0_50, %c0_51], %104 {strides = array<i32>} : memref<16x1xf32, #tpu.memory_space<vmem>>, vector<16x1xf32>,
      %cst_52 = arith.constant 1.000000e+00 : f32
      %107 = vector.broadcast %cst_52 : f32 to vector<16x1xf32>
      %c0_53 = arith.constant 0 : index
      %c0_54 = arith.constant 0 : index
      %108 = vector.load %arg10[%c0_53, %c0_54] : memref<16x1xf32, #tpu.memory_space<vmem>>, vector<16x1xf32>
      tpu.vector_store %arg10[%c0_53, %c0_54], %107 {strides = array<i32>} : memref<16x1xf32, #tpu.memory_space<vmem>>, vector<16x1xf32>,
      %cst_55 = arith.constant 0xFF800000 : f32
      %109 = vector.broadcast %cst_55 : f32 to vector<16x1xf32>
      %c0_56 = arith.constant 0 : index
      %c0_57 = arith.constant 0 : index
      %110 = vector.load %arg11[%c0_56, %c0_57] : memref<16x1xf32, #tpu.memory_space<vmem>>, vector<16x1xf32>
      tpu.vector_store %arg11[%c0_56, %c0_57], %109 {strides = array<i32>} : memref<16x1xf32, #tpu.memory_space<vmem>>, vector<16x1xf32>,
    } else {
    }
    %c0 = arith.constant 0 : index
    %c0_1 = arith.constant 0 : index
    %3 = vector.load %arg7[%c0, %c0_1] : memref<16x32xf32, #tpu.memory_space<vmem>>, vector<16x32xf32>
    %c0_2 = arith.constant 0 : index
    %c0_3 = arith.constant 0 : index
    %c0_4 = arith.constant 0 : index
    %4 = vector.load %arg5[%c0_2, %c0_3, %c0_4] : memref<4x16x32xf32, #tpu.memory_space<vmem>>, vector<1x16x32xf32>
    %5 = vector.shape_cast %4 : vector<1x16x32xf32> to vector<16x32xf32>
    %6 = arith.mulf %3, %5 : vector<16x32xf32>
    %cst = arith.constant dense<0.000000e+00> : vector<16xf32>
    %7 = vector.multi_reduction <add>, %6, %cst [1] : vector<16x32xf32> to vector<16xf32>
    %8 = vector.shape_cast %7 : vector<16xf32> to vector<16x1xf32>
    %9 = arith.mulf %5, %5 : vector<16x32xf32>
    %cst_5 = arith.constant dense<0.000000e+00> : vector<16xf32>
    %10 = vector.multi_reduction <add>, %9, %cst_5 [1] : vector<16x32xf32> to vector<16xf32>
    %11 = vector.shape_cast %10 : vector<16xf32> to vector<16x1xf32>
    %cst_6 = arith.constant 1.000000e-24 : f32
    %12 = vector.broadcast %cst_6 : f32 to vector<16x1xf32>
    %13 = arith.maximumf %11, %12 : vector<16x1xf32>
    %14 = math.rsqrt %13 : vector<16x1xf32>
    %15 = arith.mulf %8, %14 : vector<16x1xf32>
    %c1 = arith.constant 1 : index
    %c0_7 = arith.constant 0 : index
    %c0_8 = arith.constant 0 : index
    %16 = vector.load %arg5[%c1, %c0_7, %c0_8] : memref<4x16x32xf32, #tpu.memory_space<vmem>>, vector<1x16x32xf32>
    %17 = vector.shape_cast %16 : vector<1x16x32xf32> to vector<16x32xf32>
    %18 = arith.mulf %3, %17 : vector<16x32xf32>
    %cst_9 = arith.constant dense<0.000000e+00> : vector<16xf32>
    %19 = vector.multi_reduction <add>, %18, %cst_9 [1] : vector<16x32xf32> to vector<16xf32>
    %20 = vector.shape_cast %19 : vector<16xf32> to vector<16x1xf32>
    %21 = arith.mulf %17, %17 : vector<16x32xf32>
    %cst_10 = arith.constant dense<0.000000e+00> : vector<16xf32>
    %22 = vector.multi_reduction <add>, %21, %cst_10 [1] : vector<16x32xf32> to vector<16xf32>
    %23 = vector.shape_cast %22 : vector<16xf32> to vector<16x1xf32>
    %cst_11 = arith.constant 1.000000e-24 : f32
    %24 = vector.broadcast %cst_11 : f32 to vector<16x1xf32>
    %25 = arith.maximumf %23, %24 : vector<16x1xf32>
    %26 = math.rsqrt %25 : vector<16x1xf32>
    %27 = arith.mulf %20, %26 : vector<16x1xf32>
    %c2 = arith.constant 2 : index
    %c0_12 = arith.constant 0 : index
    %c0_13 = arith.constant 0 : index
    %28 = vector.load %arg5[%c2, %c0_12, %c0_13] : memref<4x16x32xf32, #tpu.memory_space<vmem>>, vector<1x16x32xf32>
    %29 = vector.shape_cast %28 : vector<1x16x32xf32> to vector<16x32xf32>
    %30 = arith.mulf %3, %29 : vector<16x32xf32>
    %cst_14 = arith.constant dense<0.000000e+00> : vector<16xf32>
    %31 = vector.multi_reduction <add>, %30, %cst_14 [1] : vector<16x32xf32> to vector<16xf32>
    %32 = vector.shape_cast %31 : vector<16xf32> to vector<16x1xf32>
    %33 = arith.mulf %29, %29 : vector<16x32xf32>
    %cst_15 = arith.constant dense<0.000000e+00> : vector<16xf32>
    %34 = vector.multi_reduction <add>, %33, %cst_15 [1] : vector<16x32xf32> to vector<16xf32>
    %35 = vector.shape_cast %34 : vector<16xf32> to vector<16x1xf32>
    %cst_16 = arith.constant 1.000000e-24 : f32
    %36 = vector.broadcast %cst_16 : f32 to vector<16x1xf32>
    %37 = arith.maximumf %35, %36 : vector<16x1xf32>
    %38 = math.rsqrt %37 : vector<16x1xf32>
    %39 = arith.mulf %32, %38 : vector<16x1xf32>
    %c3 = arith.constant 3 : index
    %c0_17 = arith.constant 0 : index
    %c0_18 = arith.constant 0 : index
    %40 = vector.load %arg5[%c3, %c0_17, %c0_18] : memref<4x16x32xf32, #tpu.memory_space<vmem>>, vector<1x16x32xf32>
    %41 = vector.shape_cast %40 : vector<1x16x32xf32> to vector<16x32xf32>
    %42 = arith.mulf %3, %41 : vector<16x32xf32>
    %cst_19 = arith.constant dense<0.000000e+00> : vector<16xf32>
    %43 = vector.multi_reduction <add>, %42, %cst_19 [1] : vector<16x32xf32> to vector<16xf32>
    %44 = vector.shape_cast %43 : vector<16xf32> to vector<16x1xf32>
    %45 = arith.mulf %41, %41 : vector<16x32xf32>
    %cst_20 = arith.constant dense<0.000000e+00> : vector<16xf32>
    %46 = vector.multi_reduction <add>, %45, %cst_20 [1] : vector<16x32xf32> to vector<16xf32>
    %47 = vector.shape_cast %46 : vector<16xf32> to vector<16x1xf32>
    %cst_21 = arith.constant 1.000000e-24 : f32
    %48 = vector.broadcast %cst_21 : f32 to vector<16x1xf32>
    %49 = arith.maximumf %47, %48 : vector<16x1xf32>
    %50 = math.rsqrt %49 : vector<16x1xf32>
    %51 = arith.mulf %44, %50 : vector<16x1xf32>
    %52 = arith.maximumf %15, %27 : vector<16x1xf32>
    %53 = arith.maximumf %39, %51 : vector<16x1xf32>
    %54 = arith.maximumf %52, %53 : vector<16x1xf32>
    %c0_22 = arith.constant 0 : index
    %c0_23 = arith.constant 0 : index
    %55 = vector.load %arg9[%c0_22, %c0_23] : memref<16x1xf32, #tpu.memory_space<vmem>>, vector<16x1xf32>
    %56 = arith.maximumf %55, %54 : vector<16x1xf32>
    %c0_24 = arith.constant 0 : index
    %c0_25 = arith.constant 0 : index
    %57 = vector.load %arg10[%c0_24, %c0_25] : memref<16x1xf32, #tpu.memory_space<vmem>>, vector<16x1xf32>
    %58 = arith.subf %55, %56 : vector<16x1xf32>
    %59 = math.exp %58 : vector<16x1xf32>
    %60 = arith.mulf %57, %59 : vector<16x1xf32>
    %61 = arith.subf %15, %56 : vector<16x1xf32>
    %62 = math.exp %61 : vector<16x1xf32>
    %63 = arith.subf %27, %56 : vector<16x1xf32>
    %64 = math.exp %63 : vector<16x1xf32>
    %65 = arith.subf %39, %56 : vector<16x1xf32>
    %66 = math.exp %65 : vector<16x1xf32>
    %67 = arith.subf %51, %56 : vector<16x1xf32>
    %68 = math.exp %67 : vector<16x1xf32>
    %69 = arith.addf %60, %62 : vector<16x1xf32>
    %70 = arith.addf %64, %66 : vector<16x1xf32>
    %71 = arith.addf %69, %70 : vector<16x1xf32>
    %72 = arith.addf %71, %68 : vector<16x1xf32>
    %c0_26 = arith.constant 0 : index
    %c0_27 = arith.constant 0 : index
    %73 = vector.load %arg10[%c0_26, %c0_27] : memref<16x1xf32, #tpu.memory_space<vmem>>, vector<16x1xf32>
    tpu.vector_store %arg10[%c0_26, %c0_27], %72 {strides = array<i32>} : memref<16x1xf32, #tpu.memory_space<vmem>>, vector<16x1xf32>,
    %c0_28 = arith.constant 0 : index
    %c0_29 = arith.constant 0 : index
    %74 = vector.load %arg9[%c0_28, %c0_29] : memref<16x1xf32, #tpu.memory_space<vmem>>, vector<16x1xf32>
    tpu.vector_store %arg9[%c0_28, %c0_29], %56 {strides = array<i32>} : memref<16x1xf32, #tpu.memory_space<vmem>>, vector<16x1xf32>,
    %c0_30 = arith.constant 0 : index
    %c0_31 = arith.constant 0 : index
    %75 = vector.load %arg11[%c0_30, %c0_31] : memref<16x1xf32, #tpu.memory_space<vmem>>, vector<16x1xf32>
    %76 = arith.maximumf %75, %54 : vector<16x1xf32>
    %c0_32 = arith.constant 0 : index
    %c0_33 = arith.constant 0 : index
    %77 = vector.load %arg11[%c0_32, %c0_33] : memref<16x1xf32, #tpu.memory_space<vmem>>, vector<16x1xf32>
    tpu.vector_store %arg11[%c0_32, %c0_33], %76 {strides = array<i32>} : memref<16x1xf32, #tpu.memory_space<vmem>>, vector<16x1xf32>,
    %c0_i32_34 = arith.constant 0 : i32
    %78 = arith.cmpi eq, %arg1, %c0_i32_34 : i32
    %79 = arith.extui %78 : i1 to i32
    %c0_i32_35 = arith.constant 0 : i32
    %80 = arith.cmpi ne, %79, %c0_i32_35 : i32
    scf.if %80 {
      %c0_36 = arith.constant 0 : index
      %c0_37 = arith.constant 0 : index
      %81 = vector.load %arg8[%c0_36, %c0_37] : memref<16x1xf32, #tpu.memory_space<vmem>>, vector<16x1xf32>
      %c0_38 = arith.constant 0 : index
      %c0_39 = arith.constant 0 : index
      %82 = vector.load %arg9[%c0_38, %c0_39] : memref<16x1xf32, #tpu.memory_space<vmem>>, vector<16x1xf32>
      %83 = arith.subf %82, %81 : vector<16x1xf32>
      %c0_40 = arith.constant 0 : index
      %c0_41 = arith.constant 0 : index
      %84 = vector.load %arg10[%c0_40, %c0_41] : memref<16x1xf32, #tpu.memory_space<vmem>>, vector<16x1xf32>
      %85 = math.log %84 : vector<16x1xf32>
      %86 = arith.addf %83, %85 : vector<16x1xf32>
      %c0_42 = arith.constant 0 : index
      %c0_43 = arith.constant 0 : index
      %87 = vector.load %arg11[%c0_42, %c0_43] : memref<16x1xf32, #tpu.memory_space<vmem>>, vector<16x1xf32>
      %88 = arith.cmpf oge, %81, %87 : vector<16x1xf32>
      %89 = arith.extui %88 : vector<16x1xi1> to vector<16x1xi32>
      %90 = arith.sitofp %89 : vector<16x1xi32> to vector<16x1xf32>
      %c0_44 = arith.constant 0 : index
      %c0_45 = arith.constant 0 : index
      %91 = vector.load %arg2[%c0_44, %c0_45] : memref<16x1xf32, #tpu.memory_space<vmem>>, vector<16x1xf32>
      %cst_46 = arith.constant 0.000000e+00 : f32
      %92 = vector.broadcast %cst_46 : f32 to vector<16x1xf32>
      %93 = arith.cmpf ogt, %91, %92 : vector<16x1xf32>
      %cst_47 = arith.constant 0.000000e+00 : f32
      %94 = vector.broadcast %cst_47 : f32 to vector<16x1xf32>
      %95 = arith.select %93, %86, %94 : vector<16x1xi1>, vector<16x1xf32>
      %cst_48 = arith.constant 0.000000e+00 : f32
      %96 = vector.broadcast %cst_48 : f32 to vector<16x1xf32>
      %97 = arith.select %93, %90, %96 : vector<16x1xi1>, vector<16x1xf32>
      %cst_49 = arith.constant dense<0.000000e+00> : vector<1xf32>
      %98 = vector.multi_reduction <add>, %95, %cst_49 [0] : vector<16x1xf32> to vector<1xf32>
      %99 = vector.shape_cast %98 : vector<1xf32> to vector<1x1xf32>
      %cst_50 = arith.constant dense<0.000000e+00> : vector<1xf32>
      %100 = vector.multi_reduction <add>, %97, %cst_50 [0] : vector<16x1xf32> to vector<1xf32>
      %101 = vector.shape_cast %100 : vector<1xf32> to vector<1x1xf32>
      %102 = tpu.iota {dimensions = array<i32: 0>} : vector<8x128xi32>
      %c4_i32 = arith.constant 4 : i32
      %103 = vector.broadcast %c4_i32 : i32 to vector<8x128xi32>
      %104 = arith.cmpi slt, %102, %103 : vector<8x128xi32>
      %105 = vector.shape_cast %99 : vector<1x1xf32> to vector<1x1xf32>
      %106 = vector.broadcast %105 : vector<1x1xf32> to vector<8x128xf32>
      %107 = vector.shape_cast %101 : vector<1x1xf32> to vector<1x1xf32>
      %108 = vector.broadcast %107 : vector<1x1xf32> to vector<8x128xf32>
      %109 = arith.select %104, %106, %108 : vector<8x128xi1>, vector<8x128xf32>
      %c0_51 = arith.constant 0 : index
      %c0_52 = arith.constant 0 : index
      %c0_53 = arith.constant 0 : index
      %110 = vector.load %arg6[%c0_51, %c0_52, %c0_53] : memref<1x8x128xf32, #tpu.memory_space<vmem>>, vector<1x8x128xf32>
      %111 = vector.shape_cast %110 : vector<1x8x128xf32> to vector<8x128xf32>
      %112 = vector.shape_cast %109 : vector<8x128xf32> to vector<1x8x128xf32>
      tpu.vector_store %arg6[%c0_51, %c0_52, %c0_53], %112 {strides = array<i32>} : memref<1x8x128xf32, #tpu.memory_space<vmem>>, vector<1x8x128xf32>,
    } else {
    }
    return
  }
  func.func @transform_0(%arg0: i32, %arg1: i32) -> (i32, i32) {
    %c0_i32 = arith.constant 0 : i32
    %c0_i32_0 = arith.constant 0 : i32
    return %arg0, %c0_i32 : i32, i32
  }
  func.func @transform_1(%arg0: i32, %arg1: i32) -> (i32, i32) {
    %c0_i32 = arith.constant 0 : i32
    %c0_i32_0 = arith.constant 0 : i32
    return %arg0, %c0_i32 : i32, i32
  }
  func.func @transform_2(%arg0: i32, %arg1: i32) -> (i32, i32) {
    %c0_i32 = arith.constant 0 : i32
    %c0_i32_0 = arith.constant 0 : i32
    return %arg0, %c0_i32 : i32, i32
  }
  func.func @transform_3(%arg0: i32, %arg1: i32) -> (i32, i32, i32) {
    %c0_i32 = arith.constant 0 : i32
    %c0_i32_0 = arith.constant 0 : i32
    return %arg1, %arg0, %c0_i32 : i32, i32, i32
  }
  func.func @transform_4(%arg0: i32, %arg1: i32) -> (i32, i32, i32) {
    %c0_i32 = arith.constant 0 : i32
    %c0_i32_0 = arith.constant 0 : i32
    %c0_i32_1 = arith.constant 0 : i32
    return %arg0, %c0_i32, %c0_i32_0 : i32, i32, i32
  }
}

</mosaic_0001>

<llo_original>
// kernel: tpu_custom_call.1
$region0: #{tpu_custom_call.1}
  #allocation0 [shape = 'u32[]', space=smem, size = 0x4, offset = 0x4, fixed_abs, tag = 'smem constant byte address 0x4 - core index']
  #allocation1 [shape = 'u32[144,128]{1,0:T(1,128)}', space=vmem, size = 0x12000, scoped, tag = 'internal scratch']
  #allocation2 [shape = 'f32[16,32]{1,0:T(8,128)}', space=vmem, size = 0x2000, scoped, tag = 'scratch operand']
  #allocation3 [shape = 'f32[16,1]{1,0:T(8,128)}', space=vmem, size = 0x2000, scoped, tag = 'scratch operand']
  #allocation4 [shape = 'f32[16,1]{1,0:T(8,128)}', space=vmem, size = 0x2000, scoped, tag = 'scratch operand']
  #allocation5 [shape = 'f32[16,1]{1,0:T(8,128)}', space=vmem, size = 0x2000, scoped, tag = 'scratch operand']
  #allocation6 [shape = 'f32[16,1]{1,0:T(8,128)}', space=vmem, size = 0x2000, scoped, tag = 'scratch operand']
  %s0 = inlined_call_operand.vmem [shape: f32[16,1], index: 0, kind: input, shape index: {}]
  %s1 = inlined_call_operand.vmem [shape: f32[16,32], index: 1, kind: input, shape index: {}]
  %s2 = inlined_call_operand.hbm [shape: f32[16,32], index: 2, kind: input, shape index: {}]
  %s3 = inlined_call_operand.hbm [shape: f32[4,16,32], index: 3, kind: input, shape index: {}]
  %s4 = inlined_call_operand.hbm [shape: f32[1,8,128], index: 4, kind: output, shape index: {}]
  %s5 = sld [smem:[#allocation0]]
  $region42: #{tpu_custom_call.1} parent=0
    _
  %s7 = ssub.s32 1, %s5
  %s8 = scalar_select 0, %s7, %s5
  $region1: #{tpu_custom_call.1} parent=0
    #allocation7 [shape = 'u8[8192]{0}', space=vmem, size = 0x2000, scoped, tag = 'input window, operand 2, single buffered']
    #allocation8 [shape = 's32[1]{0}', space=sflag, size = 0x4, scoped, tag = 'scoped memory for tpu_custom_call.1']
    #allocation9 [shape = 's32[1]{0}', space=sflag, size = 0x4, scoped, tag = 'scoped memory for tpu_custom_call.1']
    #allocation10 [shape = 'u8[32768]{0}', space=vmem, size = 0x8000, scoped, tag = 'input window, operand 3, single buffered']
    #allocation11 [shape = 's32[1]{0}', space=sflag, size = 0x4, scoped, tag = 'scoped memory for tpu_custom_call.1']
    #allocation12 [shape = 'u8[4096]{0}', space=vmem, size = 0x1000, scoped, tag = 'output window, operand 0, single buffered']
    %9 = vsyncpa [#allocation8], 0
    %10 = vsyncpa [#allocation11], 0
    %11 = vsyncpa [#allocation9], 0
    // Predicated region
    $region2: #{tpu_custom_call.1} parent=1 // pred_check
      _
    $region3: #{tpu_custom_call.1} parent=1 // pred_check_branch
      %13 = sbr.rel (0) target = $region5
    $region4: #{tpu_custom_call.1} parent=1 // pred_region
      _
    $region5: #{tpu_custom_call.1} parent=1 // pred_fallthru
      _
    // Predicated region
    $region6: #{tpu_custom_call.1} parent=1 // pred_check
      _
    $region7: #{tpu_custom_call.1} parent=1 // pred_check_branch
      %15 = sbr.rel (0) target = $region9
    $region8: #{tpu_custom_call.1} parent=1 // pred_region
      _
    $region9: #{tpu_custom_call.1} parent=1 // pred_fallthru
      _
    // Predicated region
    $region10: #{tpu_custom_call.1} parent=1 // pred_check
      _
    $region11: #{tpu_custom_call.1} parent=1 // pred_check_branch
      %17 = sbr.rel (0) target = $region13
    $region12: #{tpu_custom_call.1} parent=1 // pred_region
      %s19 = ssub.s32 256, 256
      %20 = vsyncadd [#allocation8], %s19
      %s21 = sshll.u32 [#allocation7], 4
      %s22 = int_to_ptr.vmem [resolvable:$true] %s21
      %27 = dma.hbm_to_vmem [thread:$0]  %s2, 256, %s22, [#allocation8], 128, 128, 8
    $region13: #{tpu_custom_call.1} parent=1 // pred_fallthru
      _
    // Predicated region
    $region14: #{tpu_custom_call.1} parent=1 // pred_check
      _
    $region15: #{tpu_custom_call.1} parent=1 // pred_check_branch
      %29 = sbr.rel (0) target = $region17
    $region16: #{tpu_custom_call.1} parent=1 // pred_region
      %s31 = ssub.s32 1024, 1024
      %32 = vsyncadd [#allocation11], %s31
      %s33 = sshll.u32 [#allocation10], 4
      %s34 = int_to_ptr.vmem [resolvable:$true] %s33
      %39 = dma.hbm_to_vmem [thread:$0]  %s3, 1024, %s34, [#allocation11], 128, 128, 8
    $region17: #{tpu_custom_call.1} parent=1 // pred_fallthru
      _
    // Predicated region
    $region18: #{tpu_custom_call.1} parent=1 // pred_check
      _
    $region19: #{tpu_custom_call.1} parent=1 // pred_check_branch
      %41 = sbr.rel (0) target = $region21
    $region20: #{tpu_custom_call.1} parent=1 // pred_region
      %42 = dma.done [#allocation8], 256
    $region21: #{tpu_custom_call.1} parent=1 // pred_fallthru
      _
    // Predicated region
    $region22: #{tpu_custom_call.1} parent=1 // pred_check
      _
    $region23: #{tpu_custom_call.1} parent=1 // pred_check_branch
      %44 = sbr.rel (0) target = $region25
    $region24: #{tpu_custom_call.1} parent=1 // pred_region
      %45 = dma.done [#allocation11], 1024
    $region25: #{tpu_custom_call.1} parent=1 // pred_fallthru
      _
    %p46 = scmp.eq.s32.totalorder 0, 0
    // Predicated region
    $region26: #{tpu_custom_call.1} parent=1 // pred_check
      %p47 = pneg %p46
    $region27: #{tpu_custom_call.1} parent=1 // pred_check_branch
      %49 = sbr.rel (%p47) target = $region29
    $region28: #{tpu_custom_call.1} parent=1 // pred_region
      %v50 = vld [vmem:[%s1] sm:$0xff]
      %v51 = vld [vmem:[%s1 + $0x8] sm:$0xff]
      %v52 = vld [vmem:[#allocation7] sm:$0xff]
      %v53 = vld [vmem:[#allocation7 + $0x8] sm:$0xff]
      %v54 = vmul.f32 %v50, %v50
      %v55 = vmul.f32 %v51, %v51
      %vm56 = vcmask 261120
      %v57 = vsel %vm56, %v54, 0.0
      %58 = vadd.xlane.f32.xlu0 %v57
      %v59 = vpop.xlane.xlu0 %58
      %v60 = vsel %vm56, %v55, 0.0
      %61 = vadd.xlane.f32.xlu0 %v60
      %v62 = vpop.xlane.xlu0 %61
      %v63 = vmul.f32 %v52, %v52
      %v64 = vmul.f32 %v53, %v53
      %v65 = vsel %vm56, %v63, 0.0
      %66 = vadd.xlane.f32.xlu0 %v65
      %v67 = vpop.xlane.xlu0 %66
      %v68 = vsel %vm56, %v64, 0.0
      %69 = vadd.xlane.f32.xlu0 %v68
      %v70 = vpop.xlane.xlu0 %69
      %v71 = vmax.f32 %v59, 1e-24
      %v72 = vmax.f32 %v62, 1e-24
      %v73 = vrsqrt.pop %v71
      %v74 = vrsqrt.pop %v72
      %v75 = vmul.f32 %v73, 10.0
      %v76 = vmul.f32 %v74, 10.0
      %v77 = vmul.f32 %v50, %v75
      %v78 = vmul.f32 %v51, %v76
      %v79 = vmax.f32 %v67, 1e-24
      %v80 = vmax.f32 %v70, 1e-24
      %v81 = vrsqrt.pop %v79
      %v82 = vrsqrt.pop %v80
      %v83 = vmul.f32 %v52, %v81
      %v84 = vmul.f32 %v53, %v82
      %85 = vst.msk [vmem:[#allocation2] sm:$0xff] %vm56, %v77
      %86 = vst.msk [vmem:[#allocation2 + $0x8] sm:$0xff] %vm56, %v78
      %v87 = vmul.f32 %v77, %v83
      %v88 = vmul.f32 %v78, %v84
      %v89 = vsel %vm56, %v87, 0.0
      %90 = vadd.xlane.f32.xlu0 %v89
      %v91 = vpop.xlane.xlu0 %90
      %v92 = vsel %vm56, %v88, 0.0
      %93 = vadd.xlane.f32.xlu0 %v92
      %v94 = vpop.xlane.xlu0 %93
      %vm95 = vcmask 7168
      %96 = vst.msk [vmem:[#allocation3] sm:$0xff] %vm95, %v91
      %97 = vst.msk [vmem:[#allocation3 + $0x8] sm:$0xff] %vm95, %v94
      %98 = vst.msk [vmem:[#allocation4] sm:$0xff] %vm95, %v91
      %99 = vst.msk [vmem:[#allocation4 + $0x8] sm:$0xff] %vm95, %v94
      %100 = vst.msk [vmem:[#allocation5] sm:$0xff] %vm95, 1.0
      %101 = vst.msk [vmem:[#allocation5 + $0x8] sm:$0xff] %vm95, 1.0
      %102 = vst.msk [vmem:[#allocation6] sm:$0xff] %vm95, -inf
      %103 = vst.msk [vmem:[#allocation6 + $0x8] sm:$0xff] %vm95, -inf
    $region29: #{tpu_custom_call.1} parent=1 // pred_fallthru
      _
    %v104 = vld [vmem:[#allocation2] sm:$0xff]
    %v105 = vld [vmem:[#allocation2 + $0x8] sm:$0xff]
    %v106 = vld [vmem:[#allocation10] sm:$0xff]
    %v107 = vld [vmem:[#allocation10 + $0x8] sm:$0xff]
    %v108 = vmul.f32 %v104, %v106
    %v109 = vmul.f32 %v105, %v107
    %vm110 = vcmask 261120
    %v111 = vsel %vm110, %v108, 0.0
    %112 = vadd.xlane.f32.xlu0 %v111
    %v113 = vpop.xlane.xlu0 %112
    %v114 = vsel %vm110, %v109, 0.0
    %115 = vadd.xlane.f32.xlu0 %v114
    %v116 = vpop.xlane.xlu0 %115
    %v117 = vmul.f32 %v106, %v106
    %v118 = vmul.f32 %v107, %v107
    %v119 = vsel %vm110, %v117, 0.0
    %120 = vadd.xlane.f32.xlu0 %v119
    %v121 = vpop.xlane.xlu0 %120
    %v122 = vsel %vm110, %v118, 0.0
    %123 = vadd.xlane.f32.xlu0 %v122
    %v124 = vpop.xlane.xlu0 %123
    %v125 = vmax.f32 %v121, 1e-24
    %v126 = vmax.f32 %v124, 1e-24
    %v127 = vrsqrt.pop %v125
    %v128 = vrsqrt.pop %v126
    %v129 = vmul.f32 %v113, %v127
    %v130 = vmul.f32 %v116, %v128
    %s131 = scalar_lea.vmem [#allocation10], 16
    %v132 = vld [vmem:[%s131] sm:$0xff]
    %v133 = vld [vmem:[%s131 + $0x8] sm:$0xff]
    %v134 = vmul.f32 %v104, %v132
    %v135 = vmul.f32 %v105, %v133
    %v136 = vsel %vm110, %v134, 0.0
    %137 = vadd.xlane.f32.xlu0 %v136
    %v138 = vpop.xlane.xlu0 %137
    %v139 = vsel %vm110, %v135, 0.0
    %140 = vadd.xlane.f32.xlu0 %v139
    %v141 = vpop.xlane.xlu0 %140
    %v142 = vmul.f32 %v132, %v132
    %v143 = vmul.f32 %v133, %v133
    %v144 = vsel %vm110, %v142, 0.0
    %145 = vadd.xlane.f32.xlu0 %v144
    %v146 = vpop.xlane.xlu0 %145
    %v147 = vsel %vm110, %v143, 0.0
    %148 = vadd.xlane.f32.xlu0 %v147
    %v149 = vpop.xlane.xlu0 %148
    %v150 = vmax.f32 %v146, 1e-24
    %v151 = vmax.f32 %v149, 1e-24
    %v152 = vrsqrt.pop %v150
    %v153 = vrsqrt.pop %v151
    %v154 = vmul.f32 %v138, %v152
    %v155 = vmul.f32 %v141, %v153
    %s156 = scalar_lea.vmem [#allocation10], 32
    %v157 = vld [vmem:[%s156] sm:$0xff]
    %v158 = vld [vmem:[%s156 + $0x8] sm:$0xff]
    %v159 = vmul.f32 %v104, %v157
    %v160 = vmul.f32 %v105, %v158
    %v161 = vsel %vm110, %v159, 0.0
    %162 = vadd.xlane.f32.xlu0 %v161
    %v163 = vpop.xlane.xlu0 %162
    %v164 = vsel %vm110, %v160, 0.0
    %165 = vadd.xlane.f32.xlu0 %v164
    %v166 = vpop.xlane.xlu0 %165
    %v167 = vmul.f32 %v157, %v157
    %v168 = vmul.f32 %v158, %v158
    %v169 = vsel %vm110, %v167, 0.0
    %170 = vadd.xlane.f32.xlu0 %v169
    %v171 = vpop.xlane.xlu0 %170
    %v172 = vsel %vm110, %v168, 0.0
    %173 = vadd.xlane.f32.xlu0 %v172
    %v174 = vpop.xlane.xlu0 %173
    %v175 = vmax.f32 %v171, 1e-24
    %v176 = vmax.f32 %v174, 1e-24
    %v177 = vrsqrt.pop %v175
    %v178 = vrsqrt.pop %v176
    %v179 = vmul.f32 %v163, %v177
    %v180 = vmul.f32 %v166, %v178
    %s181 = scalar_lea.vmem [#allocation10], 48
    %v182 = vld [vmem:[%s181] sm:$0xff]
    %v183 = vld [vmem:[%s181 + $0x8] sm:$0xff]
    %v184 = vmul.f32 %v104, %v182
    %v185 = vmul.f32 %v105, %v183
    %v186 = vsel %vm110, %v184, 0.0
    %187 = vadd.xlane.f32.xlu0 %v186
    %v188 = vpop.xlane.xlu0 %187
    %v189 = vsel %vm110, %v185, 0.0
    %190 = vadd.xlane.f32.xlu0 %v189
    %v191 = vpop.xlane.xlu0 %190
    %v192 = vmul.f32 %v182, %v182
    %v193 = vmul.f32 %v183, %v183
    %v194 = vsel %vm110, %v192, 0.0
    %195 = vadd.xlane.f32.xlu0 %v194
    %v196 = vpop.xlane.xlu0 %195
    %v197 = vsel %vm110, %v193, 0.0
    %198 = vadd.xlane.f32.xlu0 %v197
    %v199 = vpop.xlane.xlu0 %198
    %v200 = vmax.f32 %v196, 1e-24
    %v201 = vmax.f32 %v199, 1e-24
    %v202 = vrsqrt.pop %v200
    %v203 = vrsqrt.pop %v201
    %v204 = vmul.f32 %v188, %v202
    %v205 = vmul.f32 %v191, %v203
    %v206 = vmax.f32 %v129, %v154
    %v207 = vmax.f32 %v130, %v155
    %v208 = vmax.f32 %v179, %v204
    %v209 = vmax.f32 %v180, %v205
    %v210 = vmax.f32 %v206, %v208
    %v211 = vmax.f32 %v207, %v209
    %v212 = vld [vmem:[#allocation4] sm:$0xff]
    %v213 = vld [vmem:[#allocation4 + $0x8] sm:$0xff]
    %v214 = vmax.f32 %v212, %v210
    %v215 = vmax.f32 %v213, %v211
    %v216 = vld [vmem:[#allocation5] sm:$0xff]
    %v217 = vld [vmem:[#allocation5 + $0x8] sm:$0xff]
    %v218 = vsub.f32 %v212, %v214
    %v219 = vsub.f32 %v213, %v215
    %v220 = vmul.f32 %v218, 1.442695
    %v221 = vpow.pop %v220
    %v222 = vmul.f32 %v219, 1.442695
    %v223 = vpow.pop %v222
    %v224 = vmul.f32 %v216, %v221
    %v225 = vmul.f32 %v217, %v223
    %v226 = vsub.f32 %v129, %v214
    %v227 = vsub.f32 %v130, %v215
    %v228 = vmul.f32 %v226, 1.442695
    %v229 = vpow.pop %v228
    %v230 = vmul.f32 %v227, 1.442695
    %v231 = vpow.pop %v230
    %v232 = vsub.f32 %v154, %v214
    %v233 = vsub.f32 %v155, %v215
    %v234 = vmul.f32 %v232, 1.442695
    %v235 = vpow.pop %v234
    %v236 = vmul.f32 %v233, 1.442695
    %v237 = vpow.pop %v236
    %v238 = vsub.f32 %v179, %v214
    %v239 = vsub.f32 %v180, %v215
    %v240 = vmul.f32 %v238, 1.442695
    %v241 = vpow.pop %v240
    %v242 = vmul.f32 %v239, 1.442695
    %v243 = vpow.pop %v242
    %v244 = vsub.f32 %v204, %v214
    %v245 = vsub.f32 %v205, %v215
    %v246 = vmul.f32 %v244, 1.442695
    %v247 = vpow.pop %v246
    %v248 = vmul.f32 %v245, 1.442695
    %v249 = vpow.pop %v248
    %v250 = vadd.f32 %v224, %v229
    %v251 = vadd.f32 %v225, %v231
    %v252 = vadd.f32 %v235, %v241
    %v253 = vadd.f32 %v237, %v243
    %v254 = vadd.f32 %v250, %v252
    %v255 = vadd.f32 %v251, %v253
    %v256 = vadd.f32 %v254, %v247
    %v257 = vadd.f32 %v255, %v249
    %vm258 = vcmask 7168
    %259 = vst.msk [vmem:[#allocation5] sm:$0xff] %vm258, %v256
    %260 = vst.msk [vmem:[#allocation5 + $0x8] sm:$0xff] %vm258, %v257
    %261 = vst.msk [vmem:[#allocation4] sm:$0xff] %vm258, %v214
    %262 = vst.msk [vmem:[#allocation4 + $0x8] sm:$0xff] %vm258, %v215
    %v263 = vld [vmem:[#allocation6] sm:$0xff]
    %v264 = vld [vmem:[#allocation6 + $0x8] sm:$0xff]
    %v265 = vmax.f32 %v263, %v210
    %v266 = vmax.f32 %v264, %v211
    %267 = vst.msk [vmem:[#allocation6] sm:$0xff] %vm258, %v265
    %268 = vst.msk [vmem:[#allocation6 + $0x8] sm:$0xff] %vm258, %v266
    // Predicated region
    $region30: #{tpu_custom_call.1} parent=1 // pred_check
      %p269 = pneg %p46
    $region31: #{tpu_custom_call.1} parent=1 // pred_check_branch
      %271 = sbr.rel (%p269) target = $region33
    $region32: #{tpu_custom_call.1} parent=1 // pred_region
      %v272 = vld [vmem:[#allocation3] sm:$0xff]
      %v273 = vld [vmem:[#allocation3 + $0x8] sm:$0xff]
      %v274 = vld [vmem:[#allocation4] sm:$0xff]
      %v275 = vld [vmem:[#allocation4 + $0x8] sm:$0xff]
      %v276 = vsub.f32 %v274, %v272
      %v277 = vsub.f32 %v275, %v273
      %v278 = vld [vmem:[#allocation5] sm:$0xff]
      %v279 = vld [vmem:[#allocation5 + $0x8] sm:$0xff]
      %v280 = vlog2.pop %v278
      %v281 = vmul.f32 %v280, 0.6931472
      %v282 = vlog2.pop %v279
      %v283 = vmul.f32 %v282, 0.6931472
      %v284 = vadd.f32 %v276, %v281
      %v285 = vadd.f32 %v277, %v283
      %v286 = vld [vmem:[#allocation6] sm:$0xff]
      %v287 = vld [vmem:[#allocation6 + $0x8] sm:$0xff]
      %vm288 = vcmp.ge.f32.partialorder %v272, %v286
      %vm289 = vcmp.ge.f32.partialorder %v273, %v287
      %v290 = vsel %vm288, 1, 0
      %v291 = vsel %vm289, 1, 0
      %v292 = vcvt.s32.f32 %v290
      %v293 = vcvt.s32.f32 %v291
      %v294 = vld [vmem:[%s0] sm:$0xff]
      %v295 = vld [vmem:[%s0 + $0x8] sm:$0xff]
      %vm296 = vcmp.gt.f32.partialorder %v294, 0.0
      %vm297 = vcmp.gt.f32.partialorder %v295, 0.0
      %v298 = vsel %vm296, %v284, 0.0
      %v299 = vsel %vm297, %v285, 0.0
      %v300 = vsel %vm296, %v292, 0.0
      %v301 = vsel %vm297, %v293, 0.0
      %v302 = vsel %vm258, %v298, 0.0
      %v303 = vsel %vm258, %v299, 0.0
      %v304 = vadd.f32 %v302, %v303
      %v305 = vrot.slane %v304, 4
      %v306 = vadd.f32 %v304, %v305
      %v307 = vrot.slane %v306, 2
      %v308 = vadd.f32 %v306, %v307
      %v309 = vrot.slane %v308, 1
      %v310 = vadd.f32 %v308, %v309
      %v311 = vsel %vm258, %v300, 0.0
      %v312 = vsel %vm258, %v301, 0.0
      %v313 = vadd.f32 %v311, %v312
      %v314 = vrot.slane %v313, 4
      %v315 = vadd.f32 %v313, %v314
      %v316 = vrot.slane %v315, 2
      %v317 = vadd.f32 %v315, %v316
      %v318 = vrot.slane %v317, 1
      %v319 = vadd.f32 %v317, %v318
      %v320 = vlaneseq
      %v321 = vshrl.u32 %v320, 7
      %vm322 = vcmp.lt.s32.totalorder %v321, 4
      %324 = vset.pattern.permute.xlu0 0
      %325 = vperm.xlu0 %324, %v310
      %v326 = vpop.permute.xlu0 %325
      %329 = vset.pattern.permute.xlu0 0
      %330 = vperm.xlu0 %329, %v319
      %v331 = vpop.permute.xlu0 %330
      %v333 = vsel %vm322, %v326, %v331
      %334 = vst [vmem:[#allocation12] sm:$0xff] %v333
    $region33: #{tpu_custom_call.1} parent=1 // pred_fallthru
      _
    // Predicated region
    $region34: #{tpu_custom_call.1} parent=1 // pred_check
      _
    $region35: #{tpu_custom_call.1} parent=1 // pred_check_branch
      %336 = sbr.rel (0) target = $region37
    $region36: #{tpu_custom_call.1} parent=1 // pred_region
      %s338 = ssub.s32 128, 128
      %339 = vsyncadd [#allocation9], %s338
      %s341 = sshll.u32 [#allocation12], 4
      %s342 = int_to_ptr.vmem [resolvable:$true] %s341
      %344 = dma.vmem_to_hbm [thread:$0]  %s342, 128, %s4, [#allocation9]
    $region37: #{tpu_custom_call.1} parent=1 // pred_fallthru
      _
    // Predicated region
    $region38: #{tpu_custom_call.1} parent=1 // pred_check
      _
    $region39: #{tpu_custom_call.1} parent=1 // pred_check_branch
      %346 = sbr.rel (0) target = $region41
    $region40: #{tpu_custom_call.1} parent=1 // pred_region
      %347 = dma.done [#allocation9], 128
    $region41: #{tpu_custom_call.1} parent=1 // pred_fallthru
      _
    %348 = vsyncpa [#allocation8], 1
    %349 = vsyncpa [#allocation11], 1
    %350 = vsyncpa [#allocation9], 1

</llo_original>
